<compile_context>
chip_gen: v7x
topology: tpu7x:2x2x1
jax: 0.10.0
libtpu: 0.0.40
codegen_flags: <defaults>
</compile_context>

<pallas_src>
import functools

import jax
import jax.numpy as jnp
from jax import lax
from jax.experimental import pallas as pl
from jax.experimental.pallas import tpu as pltpu

LANE = 128
MAX_TM = 2048


def _round_up(x: int, m: int) -> int:
    return ((x + m - 1) // m) * m


def _vmem_budget_bytes() -> int:
    """Generation-aware VMEM budget (leave headroom for compiler scratch)."""
    cap = 64 * 1024 * 1024  # assume the smallest per-core VMEM (v7x) if query fails
    try:
        cap = int(pltpu.get_tpu_info().vmem_capacity_bytes)
    except Exception:
        pass
    return max(32 * 1024 * 1024, min(cap - 12 * 1024 * 1024, 100 * 1024 * 1024))


# --------------------- fused (adjacency-resident) kernel ---------------------
def _gcn_fused_kernel(adj_ref, x_ref, o_ref, *, num_layers: int):
    """One graph per grid step: adj_ref (1,Np,Np) bf16, x_ref (1,Np,Dp) bf16,
    o_ref (1,Np,Dp) f32.  Both propagation layers + L2 normalize fused."""
    a = adj_ref[0]
    h_bf16 = x_ref[0]
    h_f32 = h_bf16.astype(jnp.float32)
    for _ in range(num_layers):
        h_f32 = jnp.dot(a, h_bf16, preferred_element_type=jnp.float32)
        h_bf16 = h_f32.astype(jnp.bfloat16)
    # F.normalize(h, dim=1, p=2) == h / max(||h||, 1e-12) == h * rsqrt(max(sum(h*h), 1e-24))
    sq = jnp.sum(h_f32 * h_f32, axis=1, keepdims=True)
    o_ref[0] = h_f32 * lax.rsqrt(jnp.maximum(sq, 1e-24))


def _gcn_fused_pair(adj_stack, x_stack, *, num_layers: int, vmem_limit: int):
    """adj_stack: (G,Np,Np) bf16, x_stack: (G,Np,Dp) bf16 -> (G,Np,Dp) f32."""
    g, npad, _ = adj_stack.shape
    dpad = x_stack.shape[2]
    kernel = functools.partial(_gcn_fused_kernel, num_layers=num_layers)
    return pl.pallas_call(
        kernel,
        out_shape=jax.ShapeDtypeStruct((g, npad, dpad), jnp.float32),
        grid_spec=pltpu.PrefetchScalarGridSpec(
            num_scalar_prefetch=0,
            grid=(g,),
            in_specs=[
                pl.BlockSpec((1, npad, npad), lambda i: (i, 0, 0)),
                pl.BlockSpec((1, npad, dpad), lambda i: (i, 0, 0)),
            ],
            out_specs=pl.BlockSpec((1, npad, dpad), lambda i: (i, 0, 0)),
        ),
        compiler_params=pltpu.CompilerParams(
            dimension_semantics=("parallel",),   # one graph per TensorCore on v7x
            vmem_limit_bytes=vmem_limit,
        ),
        cost_estimate=pl.CostEstimate(
            flops=2 * g * num_layers * npad * npad * dpad,
            transcendentals=g * npad,
            bytes_accessed=g * (npad * npad * 2 + npad * dpad * 2 + npad * dpad * 4),
        ),
    )(adj_stack, x_stack)


def _fused_fits(npad: int, dpad: int, budget: int) -> bool:
    # double-buffered adj + x inputs, double-buffered f32 out, bf16/f32 intermediates
    need = (2 * npad * npad * 2 + 2 * npad * dpad * 2
            + 2 * npad * dpad * 4 + 2 * npad * dpad * 4)
    return need <= budget


# ------------------------ tiled per-layer fallback ---------------------------
def _layer_kernel_resident(adj_ref, h_ref, o_ref, *, normalize: bool):
    """adj_ref (tm,Np) bf16, h_ref (Np,Dp) bf16 (resident), o_ref (tm,Dp)."""
    h = jnp.dot(adj_ref[...], h_ref[...], preferred_element_type=jnp.float32)
    if normalize:
        sq = jnp.sum(h * h, axis=1, keepdims=True)
        h = h * lax.rsqrt(jnp.maximum(sq, 1e-24))
    o_ref[...] = h.astype(o_ref.dtype)


def _layer_kernel_ktiled(adj_ref, h_ref, o_ref, acc_ref, *, normalize: bool):
    """adj_ref (tm,tk) bf16, h_ref (tk,Dp) bf16, acc_ref (tm,Dp) f32."""
    k = pl.program_id(1)

    @pl.when(k == 0)
    def _init():
        acc_ref[...] = jnp.zeros_like(acc_ref)

    acc_ref[...] += jnp.dot(adj_ref[...], h_ref[...],
                            preferred_element_type=jnp.float32)

    @pl.when(k == pl.num_programs(1) - 1)
    def _finalize():
        h = acc_ref[...]
        if normalize:
            sq = jnp.sum(h * h, axis=1, keepdims=True)
            h = h * lax.rsqrt(jnp.maximum(sq, 1e-24))
        o_ref[...] = h.astype(o_ref.dtype)


def _gcn_layer(adj_p, h_p, *, normalize: bool, tm: int, tk: int, vmem_limit: int):
    """adj_p (Np,Np) bf16, h_p (Np,Dp) bf16 -> (Np,Dp) bf16 (f32 if normalize)."""
    npad = adj_p.shape[0]
    dpad = h_p.shape[1]
    out_dtype = jnp.float32 if normalize else jnp.bfloat16
    out_bytes = 4 if normalize else 2

    if tk == npad:
        # Reduction dim resident: 1-D grid, h DMA'd once, no accumulator.
        grid = (npad // tm,)
        kernel = functools.partial(_layer_kernel_resident, normalize=normalize)
        in_specs = [pl.BlockSpec((tm, npad), lambda i: (i, 0)),
                    pl.BlockSpec((npad, dpad), lambda i: (0, 0))]
        out_specs = pl.BlockSpec((tm, dpad), lambda i: (i, 0))
        scratch = []
        sems = ("parallel",)
        bytes_accessed = npad * npad * 2 + npad * dpad * 2 + npad * dpad * out_bytes
    else:
        grid = (npad // tm, npad // tk)
        kernel = functools.partial(_layer_kernel_ktiled, normalize=normalize)
        in_specs = [pl.BlockSpec((tm, tk), lambda i, k: (i, k)),
                    pl.BlockSpec((tk, dpad), lambda i, k: (k, 0))]
        out_specs = pl.BlockSpec((tm, dpad), lambda i, k: (i, 0))
        scratch = [pltpu.VMEM((tm, dpad), jnp.float32)]
        sems = ("parallel", "arbitrary")
        bytes_accessed = (npad * npad * 2 + (npad // tm) * npad * dpad * 2
                          + npad * dpad * out_bytes)

    return pl.pallas_call(
        kernel,
        out_shape=jax.ShapeDtypeStruct((npad, dpad), out_dtype),
        grid_spec=pltpu.PrefetchScalarGridSpec(
            num_scalar_prefetch=0,
            grid=grid,
            in_specs=in_specs,
            out_specs=out_specs,
            scratch_shapes=scratch,
        ),
        compiler_params=pltpu.CompilerParams(
            dimension_semantics=sems,
            vmem_limit_bytes=vmem_limit,
        ),
        cost_estimate=pl.CostEstimate(
            flops=2 * npad * npad * dpad,
            transcendentals=npad if normalize else 0,
            bytes_accessed=bytes_accessed,
        ),
    )(adj_p, h_p)


def _propagate(adj_p, w, n, d, npad, dpad, *, tm, tk, num_layers, vmem_limit):
    """Layer-wise tiled path. adj_p (Np,Np) bf16 (pre-padded); w (n,d) f32."""
    h = jnp.zeros((npad, dpad), jnp.bfloat16).at[:n, :d].set(w.astype(jnp.bfloat16))
    for layer_idx in range(num_layers):
        h = _gcn_layer(adj_p, h, normalize=(layer_idx == num_layers - 1),
                       tm=tm, tk=tk, vmem_limit=vmem_limit)
    return h[:n, :d].astype(jnp.float32)


def _choose_tiles(npad: int, dpad: int, budget: int):
    """Pick (tm, tk).  tk == npad means the resident-h single-axis grid."""
    divisors = [m for m in range(LANE, min(MAX_TM, npad) + 1, LANE) if npad % m == 0]

    def resident_bytes(tm):
        return 2 * tm * npad * 2 + 2 * npad * dpad * 2 + 2 * tm * dpad * 4

    ok = [m for m in divisors if resident_bytes(m) <= budget]
    if ok:
        multi = [m for m in ok if npad // m >= 2]  # keep >=2 row tiles (v7x megacore)
        return (max(multi) if multi else max(ok)), npad

    def ktile_bytes(t):
        return 2 * t * t * 2 + 2 * t * dpad * 2 + 2 * t * dpad * 4 + t * dpad * 4

    for m in sorted(divisors, reverse=True):
        if ktile_bytes(m) <= budget:
            return m, m
    return LANE, LANE


# --------------------------- parameter / graph setup -------------------------
def xavier_uniform(key, shape):
    fan_in, fan_out = shape
    bound = jnp.sqrt(6.0 / (fan_in + fan_out))
    return jax.random.uniform(key, shape, jnp.float32, -bound, bound)


def make_normalized_adj(key, n):
    """Symmetric random edges + self loops, D^{-1/2} (A + I) D^{-1/2}."""
    a = (jax.random.uniform(key, (n, n)) < 0.1).astype(jnp.float32)
    a = jnp.maximum(a, a.T)
    a = a + jnp.eye(n, dtype=jnp.float32)
    deg = jnp.sum(a, axis=1)
    d_inv_sqrt = 1.0 / jnp.sqrt(deg)
    return a * d_inv_sqrt[:, None] * d_inv_sqrt[None, :]


class GCNPallas:
    def __init__(self, num_sr, num_tg, adj_sr, adj_tg, embedding_dim,
                 dropout=0.2, layer=2):
        assert layer >= 1
        self.layer = layer
        self.dropout = dropout  # eval mode -> identity
        k_sr, k_tg = jax.random.split(jax.random.PRNGKey(42))
        # DoubleEmbedding with xavier init
        self.sr_weight = xavier_uniform(k_sr, (num_sr, embedding_dim))
        self.tg_weight = xavier_uniform(k_tg, (num_tg, embedding_dim))

        budget = _vmem_budget_bytes()
        dpad = _round_up(embedding_dim, LANE)
        npad_common = _round_up(max(num_sr, num_tg), LANE)
        self._fused = _fused_fits(npad_common, dpad, budget)

        if self._fused:
            # Hoist adjacency pad + bf16 cast out of forward (static graph).
            adj_stack = jnp.zeros((2, npad_common, npad_common), jnp.bfloat16)
            adj_stack = adj_stack.at[0, :num_sr, :num_sr].set(adj_sr.astype(jnp.bfloat16))
            adj_stack = adj_stack.at[1, :num_tg, :num_tg].set(adj_tg.astype(jnp.bfloat16))
            self._adj_stack = adj_stack

            @jax.jit
            def fwd(adj_s, sr_w, tg_w):
                x = jnp.zeros((2, npad_common, dpad), jnp.bfloat16)
                x = x.at[0, :num_sr, :embedding_dim].set(sr_w.astype(jnp.bfloat16))
                x = x.at[1, :num_tg, :embedding_dim].set(tg_w.astype(jnp.bfloat16))
                out = _gcn_fused_pair(adj_s, x, num_layers=layer, vmem_limit=budget)
                return (out[0, :num_sr, :embedding_dim],
                        out[1, :num_tg, :embedding_dim])

            self._fwd = fwd
        else:
            npad_sr = _round_up(num_sr, LANE)
            npad_tg = _round_up(num_tg, LANE)
            tm_sr, tk_sr = _choose_tiles(npad_sr, dpad, budget)
            tm_tg, tk_tg = _choose_tiles(npad_tg, dpad, budget)
            self._adj_sr_p = jnp.zeros((npad_sr, npad_sr), jnp.bfloat16
                                       ).at[:num_sr, :num_sr].set(adj_sr.astype(jnp.bfloat16))
            self._adj_tg_p = jnp.zeros((npad_tg, npad_tg), jnp.bfloat16
                                       ).at[:num_tg, :num_tg].set(adj_tg.astype(jnp.bfloat16))

            @jax.jit
            def fwd(adj_sr_p, adj_tg_p, sr_w, tg_w):
                sr = _propagate(adj_sr_p, sr_w, num_sr, embedding_dim, npad_sr, dpad,
                                tm=tm_sr, tk=tk_sr, num_layers=layer, vmem_limit=budget)
                tg = _propagate(adj_tg_p, tg_w, num_tg, embedding_dim, npad_tg, dpad,
                                tm=tm_tg, tk=tk_tg, num_layers=layer, vmem_limit=budget)
                return sr, tg

            self._fwd = fwd

    def forward(self):
        if self._fused:
            return self._fwd(self._adj_stack, self.sr_weight, self.tg_weight)
        return self._fwd(self._adj_sr_p, self._adj_tg_p,
                         self.sr_weight, self.tg_weight)


# --------------------------------- reference ---------------------------------
def _ref_forward(adj, x, num_layers):
    h = x
    for _ in range(num_layers):
        h = adj @ h
    norm = jnp.sqrt(jnp.sum(h * h, axis=1, keepdims=True))
    return h / jnp.maximum(norm, 1e-12)


if __name__ == "__main__":
    num_sr, num_tg, emb_dim = 128, 96, 64
    key = jax.random.PRNGKey(0)
    k_a, k_b = jax.random.split(key)
    adj_sr = make_normalized_adj(k_a, num_sr)
    adj_tg = make_normalized_adj(k_b, num_tg)

    model = GCNPallas(num_sr, num_tg, adj_sr, adj_tg, emb_dim, layer=2)
    sr_out, tg_out = model.forward()
    jax.block_until_ready((sr_out, tg_out))

    # sanity check against pure-JAX f32 reference (bf16 adjacency/features in the
    # kernel -> loosened tolerance; outputs are row-L2-normalized so values <= 1)
    sr_ref = _ref_forward(adj_sr, model.sr_weight, 2)
    tg_ref = _ref_forward(adj_tg, model.tg_weight, 2)
    assert sr_out.shape == (num_sr, emb_dim) and tg_out.shape == (num_tg, emb_dim)
    assert jnp.allclose(sr_out, sr_ref, atol=2e-2, rtol=2e-2)
    assert jnp.allclose(tg_out, tg_ref, atol=2e-2, rtol=2e-2)

    # Also exercise the tiled fallback paths (resident-h and k-tiled accumulator)
    # on a slightly larger graph so both fallback kernels are validated.
    n_big, d_big = 256, 64
    adj_big = make_normalized_adj(jax.random.fold_in(key, 7), n_big)
    w_big = xavier_uniform(jax.random.fold_in(key, 8), (n_big, d_big))
    npad_b, dpad_b = 256, 128
    adj_big_p = jnp.zeros((npad_b, npad_b), jnp.bfloat16
                          ).at[:n_big, :n_big].set(adj_big.astype(jnp.bfloat16))
    budget = _vmem_budget_bytes()
    ref_big = _ref_forward(adj_big, w_big, 2)
    out_res = _propagate(adj_big_p, w_big, n_big, d_big, npad_b, dpad_b,
                         tm=128, tk=npad_b, num_layers=2, vmem_limit=budget)
    out_kt = _propagate(adj_big_p, w_big, n_big, d_big, npad_b, dpad_b,
                        tm=128, tk=128, num_layers=2, vmem_limit=budget)
    jax.block_until_ready((out_res, out_kt))
    assert jnp.allclose(out_res, ref_big, atol=2e-2, rtol=2e-2)
    assert jnp.allclose(out_kt, ref_big, atol=2e-2, rtol=2e-2)

    print("KERNEL_OK")
</pallas_src>

<mosaic_0001>
module attributes {stable_mosaic.version = 11 : i64} {
  func.func @_gcn_fused_kernel(%arg0: i32, %arg1: memref<1x128x128xbf16, #tpu.memory_space<vmem>>, %arg2: memref<1x128x128xbf16, #tpu.memory_space<vmem>>, %arg3: memref<1x128x128xf32, #tpu.memory_space<vmem>>) attributes {dimension_semantics = [#tpu.dimension_semantics<parallel>], iteration_bounds = array<i64: 2>, scalar_prefetch = 0 : i64, scratch_operands = 0 : i64, tpu.core_type = #tpu.core_type<tc>, window_params = [{transform_indices = @transform_0, window_bounds = array<i64: 1, 128, 128>}, {transform_indices = @transform_1, window_bounds = array<i64: 1, 128, 128>}, {transform_indices = @transform_2, window_bounds = array<i64: 1, 128, 128>}]} {
    %c0 = arith.constant 0 : index
    %c0_0 = arith.constant 0 : index
    %c0_1 = arith.constant 0 : index
    %0 = vector.load %arg1[%c0, %c0_0, %c0_1] : memref<1x128x128xbf16, #tpu.memory_space<vmem>>, vector<1x128x128xbf16>
    %1 = vector.shape_cast %0 : vector<1x128x128xbf16> to vector<128x128xbf16>
    %c0_2 = arith.constant 0 : index
    %c0_3 = arith.constant 0 : index
    %c0_4 = arith.constant 0 : index
    %2 = vector.load %arg2[%c0_2, %c0_3, %c0_4] : memref<1x128x128xbf16, #tpu.memory_space<vmem>>, vector<1x128x128xbf16>
    %3 = vector.shape_cast %2 : vector<1x128x128xbf16> to vector<128x128xbf16>
    %cst = arith.constant dense<0.000000e+00> : vector<128x128xf32>
    %4 = tpu.matmul %1, %3, %cst {dimension_numbers = #tpu.dot_dimension_numbers<[1], [0], [0], [1], [0, 0, 1, 1], [], []>} : vector<128x128xbf16>, vector<128x128xbf16>, vector<128x128xf32> -> vector<128x128xf32>
    %5 = arith.truncf %4 : vector<128x128xf32> to vector<128x128xbf16>
    %cst_5 = arith.constant dense<0.000000e+00> : vector<128x128xf32>
    %6 = tpu.matmul %1, %5, %cst_5 {dimension_numbers = #tpu.dot_dimension_numbers<[1], [0], [0], [1], [0, 0, 1, 1], [], []>} : vector<128x128xbf16>, vector<128x128xbf16>, vector<128x128xf32> -> vector<128x128xf32>
    %7 = arith.mulf %6, %6 : vector<128x128xf32>
    %cst_6 = arith.constant dense<0.000000e+00> : vector<128xf32>
    %8 = vector.multi_reduction <add>, %7, %cst_6 [1] : vector<128x128xf32> to vector<128xf32>
    %9 = vector.shape_cast %8 : vector<128xf32> to vector<128x1xf32>
    %cst_7 = arith.constant 1.000000e-24 : f32
    %10 = vector.broadcast %cst_7 : f32 to vector<128x1xf32>
    %11 = arith.maximumf %9, %10 : vector<128x1xf32>
    %12 = math.rsqrt %11 : vector<128x1xf32>
    %13 = vector.broadcast %12 : vector<128x1xf32> to vector<128x128xf32>
    %14 = arith.mulf %6, %13 : vector<128x128xf32>
    %c0_8 = arith.constant 0 : index
    %c0_9 = arith.constant 0 : index
    %c0_10 = arith.constant 0 : index
    %15 = vector.load %arg3[%c0_8, %c0_9, %c0_10] : memref<1x128x128xf32, #tpu.memory_space<vmem>>, vector<1x128x128xf32>
    %16 = vector.shape_cast %15 : vector<1x128x128xf32> to vector<128x128xf32>
    %17 = vector.shape_cast %14 : vector<128x128xf32> to vector<1x128x128xf32>
    tpu.vector_store %arg3[%c0_8, %c0_9, %c0_10], %17 {strides = array<i32>} : memref<1x128x128xf32, #tpu.memory_space<vmem>>, vector<1x128x128xf32>,
    return
  }
  func.func @transform_0(%arg0: i32) -> (i32, i32, i32) {
    %c0_i32 = arith.constant 0 : i32
    %c0_i32_0 = arith.constant 0 : i32
    %c0_i32_1 = arith.constant 0 : i32
    return %arg0, %c0_i32, %c0_i32_0 : i32, i32, i32
  }
  func.func @transform_1(%arg0: i32) -> (i32, i32, i32) {
    %c0_i32 = arith.constant 0 : i32
    %c0_i32_0 = arith.constant 0 : i32
    %c0_i32_1 = arith.constant 0 : i32
    return %arg0, %c0_i32, %c0_i32_0 : i32, i32, i32
  }
  func.func @transform_2(%arg0: i32) -> (i32, i32, i32) {
    %c0_i32 = arith.constant 0 : i32
    %c0_i32_0 = arith.constant 0 : i32
    %c0_i32_1 = arith.constant 0 : i32
    return %arg0, %c0_i32, %c0_i32_0 : i32, i32, i32
  }
}

</mosaic_0001>

<llo_original>
// kernel: fwd.1
$region0: #{fwd.1}
  #allocation0 [shape = 'u32[]', space=smem, size = 0x4, offset = 0x4, fixed_abs, tag = 'smem constant byte address 0x4 - core index']
  #allocation1 [shape = 'u32[144,128]{1,0:T(1,128)}', space=vmem, size = 0x12000, scoped, tag = 'internal scratch']
  %s0 = inlined_call_operand.vmem [shape: bf16[2,128,128], index: 0, kind: input, shape index: {}]
  %s1 = inlined_call_operand.vmem [shape: bf16[2,128,128], index: 1, kind: input, shape index: {}]
  %s2 = inlined_call_operand.vmem [shape: f32[2,128,128], index: 2, kind: output, shape index: {}]
  %s3 = sld [smem:[#allocation0]]
  $region41: #{fwd.1} parent=0
    _
  %s5 = ssub.s32 1, %s3
  %s6 = scalar_select 0, %s5, %s3
  loop: start=0, step=1, limit=4
  $region2: #{fwd.1} parent=0 // loop_pre_header
    _
  $region3: #{fwd.1} parent=0 // loop_header
    %s8 = sphi 0, %s12
    %p9 = scmp.ge.s32.totalorder %s8, 4
    %s18 = sphi 0, %s20
    %s21 = sphi 0, %s18
    %s22 = sphi 0, %s21
    %s38 = sphi 0, %s22
    %s44 = sphi 0, %s46
    %s47 = sphi 0, %s44
    %s48 = sphi 0, %s47
    %s64 = sphi 0, %s48
    %s70 = sphi 0, %s72
    %s73 = sphi 0, %s70
    %s74 = sphi 0, %s73
    %s90 = sphi 0, %s74
  $region4: #{fwd.1} parent=0 // loop_header_branch
    %11 = sbr.rel (%p9) target = $region8
  $region5: #{fwd.1} parent=0 // loop_body
    %s13 = ssub.s32 %s8, 1
    %s14 = ssub.s32 %s8, 2
    %s15 = sadd.s32 %s8, 1
    %s16 = ssub.s32 %s8, %s15
    %p17 = scmp.eq.s32.totalorder %s16, 0
    %s19 = sadd.s32 %s18, 1
    %s20 = scalar_select %p17, %s18, %s19
    %p23 = pneg %p17
    %p24 = scmp.eq.s32.totalorder %s8, 1
    %p25 = por %p23, %p24
    %p26 = scmp.ne.s32.totalorder %s18, %s21
    %p27 = scmp.eq.s32.totalorder %s8, 0
    %p28 = por %p26, %p27
    %p29 = scmp.ne.s32.totalorder %s18, %s21
    %p30 = scmp.eq.s32.totalorder %s13, 1
    %p31 = por %p29, %p30
    %p32 = scmp.ne.s32.totalorder %s21, %s22
    %p33 = scmp.eq.s32.totalorder %s13, 0
    %p34 = por %p32, %p33
    %p35 = scmp.ne.s32.totalorder %s21, %s22
    %p36 = scmp.eq.s32.totalorder %s14, 1
    %p37 = por %p35, %p36
    %p39 = scmp.ne.s32.totalorder %s22, %s38
    %p40 = scmp.eq.s32.totalorder %s14, 0
    %p41 = por %p39, %p40
    %s42 = ssub.s32 %s8, %s15
    %p43 = scmp.eq.s32.totalorder %s42, 0
    %s45 = sadd.s32 %s44, 1
    %s46 = scalar_select %p43, %s44, %s45
    %p49 = pneg %p43
    %p50 = scmp.eq.s32.totalorder %s8, 1
    %p51 = por %p49, %p50
    %p52 = scmp.ne.s32.totalorder %s44, %s47
    %p53 = scmp.eq.s32.totalorder %s8, 0
    %p54 = por %p52, %p53
    %p55 = scmp.ne.s32.totalorder %s44, %s47
    %p56 = scmp.eq.s32.totalorder %s13, 1
    %p57 = por %p55, %p56
    %p58 = scmp.ne.s32.totalorder %s47, %s48
    %p59 = scmp.eq.s32.totalorder %s13, 0
    %p60 = por %p58, %p59
    %p61 = scmp.ne.s32.totalorder %s47, %s48
    %p62 = scmp.eq.s32.totalorder %s14, 1
    %p63 = por %p61, %p62
    %p65 = scmp.ne.s32.totalorder %s48, %s64
    %p66 = scmp.eq.s32.totalorder %s14, 0
    %p67 = por %p65, %p66
    %s68 = ssub.s32 %s8, %s15
    %p69 = scmp.eq.s32.totalorder %s68, 0
    %s71 = sadd.s32 %s70, 1
    %s72 = scalar_select %p69, %s70, %s71
    %p75 = pneg %p69
    %p76 = scmp.eq.s32.totalorder %s8, 1
    %p77 = por %p75, %p76
    %p78 = scmp.ne.s32.totalorder %s70, %s73
    %p79 = scmp.eq.s32.totalorder %s8, 0
    %p80 = por %p78, %p79
    %p81 = scmp.ne.s32.totalorder %s70, %s73
    %p82 = scmp.eq.s32.totalorder %s13, 1
    %p83 = por %p81, %p82
    %p84 = scmp.ne.s32.totalorder %s73, %s74
    %p85 = scmp.eq.s32.totalorder %s13, 0
    %p86 = por %p84, %p85
    %p87 = scmp.ne.s32.totalorder %s73, %s74
    %p88 = scmp.eq.s32.totalorder %s14, 1
    %p89 = por %p87, %p88
    %p91 = scmp.ne.s32.totalorder %s74, %s90
    %p92 = scmp.eq.s32.totalorder %s14, 0
    %p93 = por %p91, %p92
    %p94 = scmp.le.s32.totalorder 1, %s8
    %p95 = scmp.lt.s32.totalorder %s8, 3
    %p96 = pnand %p94, %p95
    %p97 = pneg %p96
    // Predicated region
    $region9: #{fwd.1} parent=5 // pred_check
      _
    $region10: #{fwd.1} parent=5 // pred_check_branch
      %99 = sbr.rel (%p96) target = $region12
    $region11: #{fwd.1} parent=5 // pred_region
      %s100 = ssub.s32 %s8, 1
    $region12: #{fwd.1} parent=5 // pred_fallthru
      _
    %p101 = scmp.lt.s32.totalorder %s8, 2
    // Predicated region
    $region13: #{fwd.1} parent=5 // pred_check
      %p102 = pneg %p101
    $region14: #{fwd.1} parent=5 // pred_check_branch
      %104 = sbr.rel (%p102) target = $region16
    $region15: #{fwd.1} parent=5 // pred_region
      // Predicated region
      $region17: #{fwd.1} parent=15 // pred_check
        %p105 = pneg %p28
      $region18: #{fwd.1} parent=15 // pred_check_branch
        %107 = sbr.rel (%p105) target = $region20
      $region19: #{fwd.1} parent=15 // pred_region
        %p108 = scmp.lt.s32.totalorder %s8, 1
        %s109 = scalar_select %p108, %s8, 1
        %s110 = smul.addr %s109, 16
        %s111 = smul.addr %s110, 4
        %s112 = scalar_lea.vmem %s0, %s111
      $region20: #{fwd.1} parent=15 // pred_fallthru
        _
      // Predicated region
      $region21: #{fwd.1} parent=15 // pred_check
        %p113 = pneg %p54
      $region22: #{fwd.1} parent=15 // pred_check_branch
        %115 = sbr.rel (%p113) target = $region24
      $region23: #{fwd.1} parent=15 // pred_region
        %p116 = scmp.lt.s32.totalorder %s8, 1
        %s117 = scalar_select %p116, %s8, 1
        %s118 = smul.addr %s117, 16
        %s119 = smul.addr %s118, 4
        %s120 = scalar_lea.vmem %s1, %s119
      $region24: #{fwd.1} parent=15 // pred_fallthru
        _
    $region16: #{fwd.1} parent=5 // pred_fallthru
      _
    %p121 = scmp.le.s32.totalorder 1, %s8
    %p122 = scmp.lt.s32.totalorder %s8, 3
    %p123 = pnand %p121, %p122
    %p124 = pneg %p123
    // Predicated region
    $region25: #{fwd.1} parent=5 // pred_check
      _
    $region26: #{fwd.1} parent=5 // pred_check_branch
      %126 = sbr.rel (%p123) target = $region28
    $region27: #{fwd.1} parent=5 // pred_region
      %s127 = ssub.s32 %s8, 1
      %p128 = scmp.lt.s32.totalorder %s13, 1
      %s129 = scalar_select %p128, %s13, 1
      %s130 = smul.addr %s129, 16
      %s131 = smul.addr %s130, 4
      %s132 = scalar_lea.vmem %s0, %s131
      %p133 = pneg %p34
      %p134 = pneg %p31
      %p135 = scmp.lt.s32.totalorder %s13, 1
      %s136 = scalar_select %p135, %s13, 1
      %s137 = smul.addr %s136, 16
      %s138 = smul.addr %s137, 4
      %s139 = scalar_lea.vmem %s1, %s138
      %p140 = pneg %p60
      %p141 = pneg %p57
      %p142 = pneg %p86
      %p143 = pneg %p83
      %p144 = scmp.lt.s32.totalorder %s13, 1
      %s145 = scalar_select %p144, %s13, 1
      %s146 = smul.addr %s145, 16
      %s147 = smul.addr %s146, 8
      %s148 = scalar_lea.vmem %s2, %s147
      %p149 = scmp.lt.s32.totalorder %s13, 1
      %s150 = scalar_select %p149, %s13, 1
      %s151 = smul.addr %s150, 16
      %s152 = smul.addr %s151, 4
      %s153 = scalar_lea.vmem %s0, %s152
      %p154 = scmp.lt.s32.totalorder %s13, 1
      %s155 = scalar_select %p154, %s13, 1
      %s156 = smul.addr %s155, 16
      %s157 = smul.addr %s156, 4
      %s158 = scalar_lea.vmem %s1, %s157
      %p159 = scmp.lt.s32.totalorder %s13, 1
      %s160 = scalar_select %p159, %s13, 1
      %s161 = smul.addr %s160, 16
      %s162 = smul.addr %s161, 8
      %s163 = scalar_lea.vmem %s2, %s162
      %v165 = vld [vmem:[%s153] sm:$0xf]
      %v166 = vld [vmem:[%s153 + $0x4] sm:$0xf]
      %v167 = vld [vmem:[%s153 + $0x8] sm:$0xf]
      %v168 = vld [vmem:[%s153 + $0xc] sm:$0xf]
      %v169 = vld [vmem:[%s153 + $0x10] sm:$0xf]
      %v170 = vld [vmem:[%s153 + $0x14] sm:$0xf]
      %v171 = vld [vmem:[%s153 + $0x18] sm:$0xf]
      %v172 = vld [vmem:[%s153 + $0x1c] sm:$0xf]
      %v173 = vld [vmem:[%s153 + $0x20] sm:$0xf]
      %v174 = vld [vmem:[%s153 + $0x24] sm:$0xf]
      %v175 = vld [vmem:[%s153 + $0x28] sm:$0xf]
      %v176 = vld [vmem:[%s153 + $0x2c] sm:$0xf]
      %v177 = vld [vmem:[%s153 + $0x30] sm:$0xf]
      %v178 = vld [vmem:[%s153 + $0x34] sm:$0xf]
      %v179 = vld [vmem:[%s153 + $0x38] sm:$0xf]
      %v180 = vld [vmem:[%s153 + $0x3c] sm:$0xf]
      %v181 = vld [vmem:[%s158] sm:$0xf]
      %v182 = vld [vmem:[%s158 + $0x4] sm:$0xf]
      %v183 = vld [vmem:[%s158 + $0x8] sm:$0xf]
      %v184 = vld [vmem:[%s158 + $0xc] sm:$0xf]
      %v185 = vld [vmem:[%s158 + $0x10] sm:$0xf]
      %v186 = vld [vmem:[%s158 + $0x14] sm:$0xf]
      %v187 = vld [vmem:[%s158 + $0x18] sm:$0xf]
      %v188 = vld [vmem:[%s158 + $0x1c] sm:$0xf]
      %v189 = vld [vmem:[%s158 + $0x20] sm:$0xf]
      %v190 = vld [vmem:[%s158 + $0x24] sm:$0xf]
      %v191 = vld [vmem:[%s158 + $0x28] sm:$0xf]
      %v192 = vld [vmem:[%s158 + $0x2c] sm:$0xf]
      %v193 = vld [vmem:[%s158 + $0x30] sm:$0xf]
      %v194 = vld [vmem:[%s158 + $0x34] sm:$0xf]
      %v195 = vld [vmem:[%s158 + $0x38] sm:$0xf]
      %v196 = vld [vmem:[%s158 + $0x3c] sm:$0xf]
      %v213 = vunpack.c.l.b16 %v165
      %v214 = vunpack.c.l.b16 %v166
      %v215 = vunpack.c.l.b16 %v167
      %v216 = vunpack.c.l.b16 %v168
      %v217 = vunpack.c.l.b16 %v169
      %v218 = vunpack.c.l.b16 %v170
      %v219 = vunpack.c.l.b16 %v171
      %v220 = vunpack.c.l.b16 %v172
      %v221 = vunpack.c.l.b16 %v173
      %v222 = vunpack.c.l.b16 %v174
      %v223 = vunpack.c.l.b16 %v175
      %v224 = vunpack.c.l.b16 %v176
      %v225 = vunpack.c.l.b16 %v177
      %v226 = vunpack.c.l.b16 %v178
      %v227 = vunpack.c.l.b16 %v179
      %v228 = vunpack.c.l.b16 %v180
      %v229 = vpack.c.b16 %v214, %v213
      %v230 = vpack.c.b16 %v216, %v215
      %v231 = vpack.c.b16 %v218, %v217
      %v232 = vpack.c.b16 %v220, %v219
      %v233 = vpack.c.b16 %v222, %v221
      %v234 = vpack.c.b16 %v224, %v223
      %v235 = vpack.c.b16 %v226, %v225
      %v236 = vpack.c.b16 %v228, %v227
      %v261 = vunpack.c.l.b16 %v181
      %v262 = vunpack.c.l.b16 %v182
      %v263 = vunpack.c.l.b16 %v183
      %v264 = vunpack.c.l.b16 %v184
      %v265 = vunpack.c.l.b16 %v185
      %v266 = vunpack.c.l.b16 %v186
      %v267 = vunpack.c.l.b16 %v187
      %v268 = vunpack.c.l.b16 %v188
      %v269 = vunpack.c.l.b16 %v189
      %v270 = vunpack.c.l.b16 %v190
      %v271 = vunpack.c.l.b16 %v191
      %v272 = vunpack.c.l.b16 %v192
      %v273 = vunpack.c.l.b16 %v193
      %v274 = vunpack.c.l.b16 %v194
      %v275 = vunpack.c.l.b16 %v195
      %v276 = vunpack.c.l.b16 %v196
      %v277 = vpack.c.b16 %v262, %v261
      %v278 = vpack.c.b16 %v264, %v263
      %v279 = vpack.c.b16 %v266, %v265
      %v280 = vpack.c.b16 %v268, %v267
      %v281 = vpack.c.b16 %v270, %v269
      %v282 = vpack.c.b16 %v272, %v271
      %v283 = vpack.c.b16 %v274, %v273
      %v284 = vpack.c.b16 %v276, %v275
      %293 = vmatprep.subr.bf16.mxu0 0
      %294 = vmatpush1.bf16.msra.mxu0 %v277
      %295 = vmatprep.subr.bf16.mxu0 0
      %296 = vmatpush1.bf16.msra.mxu0 %v278
      %297 = vmatprep.subr.bf16.mxu0 0
      %298 = vmatpush1.bf16.msra.mxu0 %v279
      %299 = vmatprep.subr.bf16.mxu0 0
      %300 = vmatpush1.bf16.msra.mxu0 %v280
      %301 = vmatprep.subr.bf16.mxu0 0
      %302 = vmatpush1.bf16.msra.mxu0 %v281
      %303 = vmatprep.subr.bf16.mxu0 0
      %304 = vmatpush1.bf16.msra.mxu0 %v282
      %305 = vmatprep.subr.bf16.mxu0 0
      %306 = vmatpush1.bf16.msra.mxu0 %v283
      %307 = vmatprep.subr.bf16.mxu0 0
      %308 = vmatpush1.bf16.msra.mxu0 %v284
      %309 = vmatprep.subr.bf16.mxu0 0
      %310 = vmatpush1.bf16.msra.mxu0 0
      %311 = vmatprep.subr.bf16.mxu0 0
      %312 = vmatpush1.bf16.msra.mxu0 0
      %313 = vmatprep.subr.bf16.mxu0 0
      %314 = vmatpush1.bf16.msra.mxu0 0
      %315 = vmatprep.subr.bf16.mxu0 0
      %316 = vmatpush1.bf16.msra.mxu0 0
      %317 = vmatprep.subr.bf16.mxu0 0
      %318 = vmatpush1.bf16.msra.mxu0 0
      %319 = vmatprep.subr.bf16.mxu0 0
      %320 = vmatpush1.bf16.msra.mxu0 0
      %321 = vmatprep.subr.bf16.mxu0 0
      %322 = vmatpush1.bf16.msra.mxu0 0
      %323 = vmatprep.subr.bf16.mxu0 0
      %324 = vmatpush1.bf16.msra.mxu0 0
      %325 = vmatprep.mubr.bf16.mxu0 0
      %326 = vmatmul.mubr.bf16.gmra.mrb[0].mxu0 %v229
      %v327 = vpop.f32.mrb[0].mxu0
      %v328 = vadd.f32 0.0, %v327
      %v329 = vpop.f32.mrb[0].mxu0
      %v330 = vpop.f32.mrb[0].mxu0
      %v331 = vadd.f32 0.0, %v330
      %v332 = vpop.f32.mrb[0].mxu0
      %333 = vmatprep.mubr.bf16.mxu0 0
      %334 = vmatmul.mubr.bf16.gmra.mrb[0].mxu0 %v230
      %v335 = vpop.f32.mrb[0].mxu0
      %v336 = vadd.f32 0.0, %v335
      %v337 = vpop.f32.mrb[0].mxu0
      %v338 = vpop.f32.mrb[0].mxu0
      %v339 = vadd.f32 0.0, %v338
      %v340 = vpop.f32.mrb[0].mxu0
      %341 = vmatprep.mubr.bf16.mxu0 0
      %342 = vmatmul.mubr.bf16.gmra.mrb[0].mxu0 %v231
      %v343 = vpop.f32.mrb[0].mxu0
      %v344 = vadd.f32 0.0, %v343
      %v345 = vpop.f32.mrb[0].mxu0
      %v346 = vpop.f32.mrb[0].mxu0
      %v347 = vadd.f32 0.0, %v346
      %v348 = vpop.f32.mrb[0].mxu0
      %349 = vmatprep.mubr.bf16.mxu0 0
      %350 = vmatmul.mubr.bf16.gmra.mrb[0].mxu0 %v232
      %v351 = vpop.f32.mrb[0].mxu0
      %v352 = vadd.f32 0.0, %v351
      %v353 = vpop.f32.mrb[0].mxu0
      %v354 = vpop.f32.mrb[0].mxu0
      %v355 = vadd.f32 0.0, %v354
      %v356 = vpop.f32.mrb[0].mxu0
      %357 = vmatprep.mubr.bf16.mxu0 0
      %358 = vmatmul.mubr.bf16.gmra.mrb[0].mxu0 %v233
      %v359 = vpop.f32.mrb[0].mxu0
      %v360 = vadd.f32 0.0, %v359
      %v361 = vpop.f32.mrb[0].mxu0
      %v362 = vpop.f32.mrb[0].mxu0
      %v363 = vadd.f32 0.0, %v362
      %v364 = vpop.f32.mrb[0].mxu0
      %365 = vmatprep.mubr.bf16.mxu0 0
      %366 = vmatmul.mubr.bf16.gmra.mrb[0].mxu0 %v234
      %v367 = vpop.f32.mrb[0].mxu0
      %v368 = vadd.f32 0.0, %v367
      %v369 = vpop.f32.mrb[0].mxu0
      %v370 = vpop.f32.mrb[0].mxu0
      %v371 = vadd.f32 0.0, %v370
      %v372 = vpop.f32.mrb[0].mxu0
      %373 = vmatprep.mubr.bf16.mxu0 0
      %374 = vmatmul.mubr.bf16.gmra.mrb[0].mxu0 %v235
      %v375 = vpop.f32.mrb[0].mxu0
      %v376 = vadd.f32 0.0, %v375
      %v377 = vpop.f32.mrb[0].mxu0
      %v378 = vpop.f32.mrb[0].mxu0
      %v379 = vadd.f32 0.0, %v378
      %v380 = vpop.f32.mrb[0].mxu0
      %381 = vmatprep.mubr.bf16.mxu0 0
      %382 = vmatmul.mubr.bf16.gmra.mrb[0].mxu0 %v236
      %v383 = vpop.f32.mrb[0].mxu0
      %v384 = vadd.f32 0.0, %v383
      %v385 = vpop.f32.mrb[0].mxu0
      %v386 = vpop.f32.mrb[0].mxu0
      %v387 = vadd.f32 0.0, %v386
      %v388 = vpop.f32.mrb[0].mxu0
      %389 = vdwg.mxu0
      %v390 = vpack.c.bf16 %v331, %v328
      %v391 = vpack.c.bf16 %v339, %v336
      %v392 = vpack.c.bf16 %v347, %v344
      %v393 = vpack.c.bf16 %v355, %v352
      %v394 = vpack.c.bf16 %v363, %v360
      %v395 = vpack.c.bf16 %v371, %v368
      %v396 = vpack.c.bf16 %v379, %v376
      %v397 = vpack.c.bf16 %v387, %v384
      %398 = vmatprep.subr.bf16.mxu0 0
      %399 = vmatpush1.bf16.msra.mxu0 %v390
      %400 = vmatprep.subr.bf16.mxu0 0
      %401 = vmatpush1.bf16.msra.mxu0 %v391
      %402 = vmatprep.subr.bf16.mxu0 0
      %403 = vmatpush1.bf16.msra.mxu0 %v392
      %404 = vmatprep.subr.bf16.mxu0 0
      %405 = vmatpush1.bf16.msra.mxu0 %v393
      %406 = vmatprep.subr.bf16.mxu0 0
      %407 = vmatpush1.bf16.msra.mxu0 %v394
      %408 = vmatprep.subr.bf16.mxu0 0
      %409 = vmatpush1.bf16.msra.mxu0 %v395
      %410 = vmatprep.subr.bf16.mxu0 0
      %411 = vmatpush1.bf16.msra.mxu0 %v396
      %412 = vmatprep.subr.bf16.mxu0 0
      %413 = vmatpush1.bf16.msra.mxu0 %v397
      %414 = vmatprep.subr.bf16.mxu0 0
      %415 = vmatpush1.bf16.msra.mxu0 0
      %416 = vmatprep.subr.bf16.mxu0 0
      %417 = vmatpush1.bf16.msra.mxu0 0
      %418 = vmatprep.subr.bf16.mxu0 0
      %419 = vmatpush1.bf16.msra.mxu0 0
      %420 = vmatprep.subr.bf16.mxu0 0
      %421 = vmatpush1.bf16.msra.mxu0 0
      %422 = vmatprep.subr.bf16.mxu0 0
      %423 = vmatpush1.bf16.msra.mxu0 0
      %424 = vmatprep.subr.bf16.mxu0 0
      %425 = vmatpush1.bf16.msra.mxu0 0
      %426 = vmatprep.subr.bf16.mxu0 0
      %427 = vmatpush1.bf16.msra.mxu0 0
      %428 = vmatprep.subr.bf16.mxu0 0
      %429 = vmatpush1.bf16.msra.mxu0 0
      %430 = vmatprep.mubr.bf16.mxu0 0
      %431 = vmatmul.mubr.bf16.gmra.mrb[0].mxu0 %v229
      %v432 = vpop.f32.mrb[0].mxu0
      %v433 = vadd.f32 0.0, %v432
      %v434 = vpop.f32.mrb[0].mxu0
      %v435 = vpop.f32.mrb[0].mxu0
      %v436 = vadd.f32 0.0, %v435
      %v437 = vpop.f32.mrb[0].mxu0
      %438 = vmatprep.mubr.bf16.mxu0 0
      %439 = vmatmul.mubr.bf16.gmra.mrb[0].mxu0 %v230
      %v440 = vpop.f32.mrb[0].mxu0
      %v441 = vadd.f32 0.0, %v440
      %v442 = vpop.f32.mrb[0].mxu0
      %v443 = vpop.f32.mrb[0].mxu0
      %v444 = vadd.f32 0.0, %v443
      %v445 = vpop.f32.mrb[0].mxu0
      %446 = vmatprep.mubr.bf16.mxu0 0
      %447 = vmatmul.mubr.bf16.gmra.mrb[0].mxu0 %v231
      %v448 = vpop.f32.mrb[0].mxu0
      %v449 = vadd.f32 0.0, %v448
      %v450 = vpop.f32.mrb[0].mxu0
      %v451 = vpop.f32.mrb[0].mxu0
      %v452 = vadd.f32 0.0, %v451
      %v453 = vpop.f32.mrb[0].mxu0
      %454 = vmatprep.mubr.bf16.mxu0 0
      %455 = vmatmul.mubr.bf16.gmra.mrb[0].mxu0 %v232
      %v456 = vpop.f32.mrb[0].mxu0
      %v457 = vadd.f32 0.0, %v456
      %v458 = vpop.f32.mrb[0].mxu0
      %v459 = vpop.f32.mrb[0].mxu0
      %v460 = vadd.f32 0.0, %v459
      %v461 = vpop.f32.mrb[0].mxu0
      %462 = vmatprep.mubr.bf16.mxu0 0
      %463 = vmatmul.mubr.bf16.gmra.mrb[0].mxu0 %v233
      %v464 = vpop.f32.mrb[0].mxu0
      %v465 = vadd.f32 0.0, %v464
      %v466 = vpop.f32.mrb[0].mxu0
      %v467 = vpop.f32.mrb[0].mxu0
      %v468 = vadd.f32 0.0, %v467
      %v469 = vpop.f32.mrb[0].mxu0
      %470 = vmatprep.mubr.bf16.mxu0 0
      %471 = vmatmul.mubr.bf16.gmra.mrb[0].mxu0 %v234
      %v472 = vpop.f32.mrb[0].mxu0
      %v473 = vadd.f32 0.0, %v472
      %v474 = vpop.f32.mrb[0].mxu0
      %v475 = vpop.f32.mrb[0].mxu0
      %v476 = vadd.f32 0.0, %v475
      %v477 = vpop.f32.mrb[0].mxu0
      %478 = vmatprep.mubr.bf16.mxu0 0
      %479 = vmatmul.mubr.bf16.gmra.mrb[0].mxu0 %v235
      %v480 = vpop.f32.mrb[0].mxu0
      %v481 = vadd.f32 0.0, %v480
      %v482 = vpop.f32.mrb[0].mxu0
      %v483 = vpop.f32.mrb[0].mxu0
      %v484 = vadd.f32 0.0, %v483
      %v485 = vpop.f32.mrb[0].mxu0
      %486 = vmatprep.mubr.bf16.mxu0 0
      %487 = vmatmul.mubr.bf16.gmra.mrb[0].mxu0 %v236
      %v488 = vpop.f32.mrb[0].mxu0
      %v489 = vadd.f32 0.0, %v488
      %v490 = vpop.f32.mrb[0].mxu0
      %v491 = vpop.f32.mrb[0].mxu0
      %v492 = vadd.f32 0.0, %v491
      %v493 = vpop.f32.mrb[0].mxu0
      %494 = vdwg.mxu0
      %v495 = vmul.f32 %v433, %v433
      %v496 = vmul.f32 %v436, %v436
      %v497 = vmul.f32 %v441, %v441
      %v498 = vmul.f32 %v444, %v444
      %v499 = vmul.f32 %v449, %v449
      %v500 = vmul.f32 %v452, %v452
      %v501 = vmul.f32 %v457, %v457
      %v502 = vmul.f32 %v460, %v460
      %v503 = vmul.f32 %v465, %v465
      %v504 = vmul.f32 %v468, %v468
      %v505 = vmul.f32 %v473, %v473
      %v506 = vmul.f32 %v476, %v476
      %v507 = vmul.f32 %v481, %v481
      %v508 = vmul.f32 %v484, %v484
      %v509 = vmul.f32 %v489, %v489
      %v510 = vmul.f32 %v492, %v492
      %511 = vadd.xlane.f32.xlu0 %v495
      %v512 = vpop.xlane.xlu0 %511
      %513 = vadd.xlane.f32.xlu0 %v496
      %v514 = vpop.xlane.xlu0 %513
      %515 = vadd.xlane.f32.xlu0 %v497
      %v516 = vpop.xlane.xlu0 %515
      %517 = vadd.xlane.f32.xlu0 %v498
      %v518 = vpop.xlane.xlu0 %517
      %519 = vadd.xlane.f32.xlu0 %v499
      %v520 = vpop.xlane.xlu0 %519
      %521 = vadd.xlane.f32.xlu0 %v500
      %v522 = vpop.xlane.xlu0 %521
      %523 = vadd.xlane.f32.xlu0 %v501
      %v524 = vpop.xlane.xlu0 %523
      %525 = vadd.xlane.f32.xlu0 %v502
      %v526 = vpop.xlane.xlu0 %525
      %527 = vadd.xlane.f32.xlu0 %v503
      %v528 = vpop.xlane.xlu0 %527
      %529 = vadd.xlane.f32.xlu0 %v504
      %v530 = vpop.xlane.xlu0 %529
      %531 = vadd.xlane.f32.xlu0 %v505
      %v532 = vpop.xlane.xlu0 %531
      %533 = vadd.xlane.f32.xlu0 %v506
      %v534 = vpop.xlane.xlu0 %533
      %535 = vadd.xlane.f32.xlu0 %v507
      %v536 = vpop.xlane.xlu0 %535
      %537 = vadd.xlane.f32.xlu0 %v508
      %v538 = vpop.xlane.xlu0 %537
      %539 = vadd.xlane.f32.xlu0 %v509
      %v540 = vpop.xlane.xlu0 %539
      %541 = vadd.xlane.f32.xlu0 %v510
      %v542 = vpop.xlane.xlu0 %541
      %v543 = vmax.f32 %v512, 1e-24
      %v544 = vmax.f32 %v514, 1e-24
      %v545 = vmax.f32 %v516, 1e-24
      %v546 = vmax.f32 %v518, 1e-24
      %v547 = vmax.f32 %v520, 1e-24
      %v548 = vmax.f32 %v522, 1e-24
      %v549 = vmax.f32 %v524, 1e-24
      %v550 = vmax.f32 %v526, 1e-24
      %v551 = vmax.f32 %v528, 1e-24
      %v552 = vmax.f32 %v530, 1e-24
      %v553 = vmax.f32 %v532, 1e-24
      %v554 = vmax.f32 %v534, 1e-24
      %v555 = vmax.f32 %v536, 1e-24
      %v556 = vmax.f32 %v538, 1e-24
      %v557 = vmax.f32 %v540, 1e-24
      %v558 = vmax.f32 %v542, 1e-24
      %v559 = vrsqrt.pop %v543
      %v560 = vrsqrt.pop %v544
      %v561 = vrsqrt.pop %v545
      %v562 = vrsqrt.pop %v546
      %v563 = vrsqrt.pop %v547
      %v564 = vrsqrt.pop %v548
      %v565 = vrsqrt.pop %v549
      %v566 = vrsqrt.pop %v550
      %v567 = vrsqrt.pop %v551
      %v568 = vrsqrt.pop %v552
      %v569 = vrsqrt.pop %v553
      %v570 = vrsqrt.pop %v554
      %v571 = vrsqrt.pop %v555
      %v572 = vrsqrt.pop %v556
      %v573 = vrsqrt.pop %v557
      %v574 = vrsqrt.pop %v558
      %v575 = vmul.f32 %v433, %v559
      %v576 = vmul.f32 %v436, %v560
      %v577 = vmul.f32 %v441, %v561
      %v578 = vmul.f32 %v444, %v562
      %v579 = vmul.f32 %v449, %v563
      %v580 = vmul.f32 %v452, %v564
      %v581 = vmul.f32 %v457, %v565
      %v582 = vmul.f32 %v460, %v566
      %v583 = vmul.f32 %v465, %v567
      %v584 = vmul.f32 %v468, %v568
      %v585 = vmul.f32 %v473, %v569
      %v586 = vmul.f32 %v476, %v570
      %v587 = vmul.f32 %v481, %v571
      %v588 = vmul.f32 %v484, %v572
      %v589 = vmul.f32 %v489, %v573
      %v590 = vmul.f32 %v492, %v574
      %591 = vst [vmem:[%s163] sm:$0xff] %v575
      %592 = vst [vmem:[%s163 + $0x8] sm:$0xff] %v576
      %593 = vst [vmem:[%s163 + $0x10] sm:$0xff] %v577
      %594 = vst [vmem:[%s163 + $0x18] sm:$0xff] %v578
      %595 = vst [vmem:[%s163 + $0x20] sm:$0xff] %v579
      %596 = vst [vmem:[%s163 + $0x28] sm:$0xff] %v580
      %597 = vst [vmem:[%s163 + $0x30] sm:$0xff] %v581
      %598 = vst [vmem:[%s163 + $0x38] sm:$0xff] %v582
      %599 = vst [vmem:[%s163 + $0x40] sm:$0xff] %v583
      %600 = vst [vmem:[%s163 + $0x48] sm:$0xff] %v584
      %601 = vst [vmem:[%s163 + $0x50] sm:$0xff] %v585
      %602 = vst [vmem:[%s163 + $0x58] sm:$0xff] %v586
      %603 = vst [vmem:[%s163 + $0x60] sm:$0xff] %v587
      %604 = vst [vmem:[%s163 + $0x68] sm:$0xff] %v588
      %605 = vst [vmem:[%s163 + $0x70] sm:$0xff] %v589
      %606 = vst [vmem:[%s163 + $0x78] sm:$0xff] %v590
      %p607 = scmp.lt.s32.totalorder %s13, 1
      %s608 = scalar_select %p607, %s13, 1
      %s609 = smul.addr %s608, 16
      %s610 = smul.addr %s609, 8
      %s611 = scalar_lea.vmem %s2, %s610
      // Predicated region
      $region29: #{fwd.1} parent=27 // pred_check
        %p612 = pneg %p83
      $region30: #{fwd.1} parent=27 // pred_check_branch
        %614 = sbr.rel (%p612) target = $region32
      $region31: #{fwd.1} parent=27 // pred_region
        _
      $region32: #{fwd.1} parent=27 // pred_fallthru
        _
    $region28: #{fwd.1} parent=5 // pred_fallthru
      _
    %p615 = scmp.le.s32.totalorder 2, %s8
    // Predicated region
    $region33: #{fwd.1} parent=5 // pred_check
      %p616 = pneg %p615
    $region34: #{fwd.1} parent=5 // pred_check_branch
      %618 = sbr.rel (%p616) target = $region36
    $region35: #{fwd.1} parent=5 // pred_region
      %s619 = ssub.s32 %s8, 2
      // Predicated region
      $region37: #{fwd.1} parent=35 // pred_check
        %p620 = pneg %p89
      $region38: #{fwd.1} parent=35 // pred_check_branch
        %622 = sbr.rel (%p620) target = $region40
      $region39: #{fwd.1} parent=35 // pred_region
        %p623 = scmp.lt.s32.totalorder %s14, 1
        %s624 = scalar_select %p623, %s14, 1
        %s625 = smul.addr %s624, 16
        %s626 = smul.addr %s625, 8
        %s627 = scalar_lea.vmem %s2, %s626
      $region40: #{fwd.1} parent=35 // pred_fallthru
        _
    $region36: #{fwd.1} parent=5 // pred_fallthru
      _
  $region6: #{fwd.1} parent=0 // loop_footer
    %s12 = sadd.s32 1, %s8
  $region7: #{fwd.1} parent=0 // loop_footer_branch
    %7 = sbr.rel target = $region3
  $region8: #{fwd.1} parent=0 // loop_exit
    _

</llo_original>
